<compile_context>
chip_gen: v7x
topology: tpu7x:2x2x1
jax: 0.10.0
libtpu: 0.0.40
codegen_flags: <defaults>
</compile_context>

<pallas_src>
import jax
import jax.numpy as jnp
from jax.experimental import pallas as pl
from jax.experimental.pallas import tpu as pltpu

BN_EPS = 1e-5

# ---- packed-parameter layout: (304, 128) f32, every row offset 8-aligned, 128 lanes wide ----
W1_R = 0       # rows   0..15   : hidden1.weight^T  (16, 32)   -> lanes 32..127 zero
G_R = 16       # row    16      : batch_norm1.weight (gamma)   -> lanes 32..127 zero
BETA_R = 24    # row    24      : batch_norm1.bias   (beta)    -> lanes 32..127 zero
W2_R = 32      # rows  32..159  : hidden2.weight^T  (32, 64)   -> K zero-padded to 128 rows
B2_R = 160     # row   160      : hidden2.bias                 -> lanes 64..127 zero
W3_R = 168     # rows 168..295  : output.weight^T   (64, 26)   -> K zero-padded to 128 rows
B3_R = 296     # row   296      : output.bias                  -> lanes 26..127 zero
PACK_ROWS = 304
PACK_LANES = 128
OUT_PAD = 128            # lane-dense output width; logical output is lanes 0..25


def _mlp_body(x, p_ref):
    """x: (B, 16) f32 -> (B, 128) f32 padded logits (lanes 26..127 are exact zeros)."""
    B = x.shape[0]

    # hidden1: Linear(16 -> 32), bias omitted (cancelled exactly by BN's batch mean).
    w1 = p_ref[W1_R:W1_R + 16, :]                                      # (16, 128)
    h1 = jnp.dot(x, w1, preferred_element_type=jnp.float32)            # (B, 128)

    # batch_norm1: BatchNorm1d(32), training-mode batch stats (biased var), one-pass form.
    inv_b = 1.0 / B
    s = jnp.sum(h1, axis=0, keepdims=True)                             # (1, 128)
    sq = jnp.sum(h1 * h1, axis=0, keepdims=True)                       # (1, 128)
    mean = s * inv_b
    var = jnp.maximum(sq * inv_b - mean * mean, 0.0)                   # clamp fp cancellation

    gamma = p_ref[G_R:G_R + 1, :]                                      # (1, 128)
    beta = p_ref[BETA_R:BETA_R + 1, :]                                 # (1, 128)
    scale = gamma * jax.lax.rsqrt(var + BN_EPS)                        # gamma folded into rsqrt
    shift = beta - mean * scale
    h1r = jnp.maximum(h1 * scale + shift, 0.0)                         # BN + ReLU, pads stay 0

    # hidden2: Linear(32 -> 64) + ReLU   (K zero-padded to 128, full-lane slice)
    w2 = p_ref[W2_R:W2_R + 128, :]                                     # (128, 128)
    b2 = p_ref[B2_R:B2_R + 1, :]                                       # (1, 128)
    h2 = jnp.maximum(jnp.dot(h1r, w2, preferred_element_type=jnp.float32) + b2, 0.0)

    # output: Linear(64 -> 26) into 128 zero-padded lanes (lane-dense store).
    w3 = p_ref[W3_R:W3_R + 128, :]                                     # (128, 128)
    b3 = p_ref[B3_R:B3_R + 1, :]                                       # (1, 128)
    return jnp.dot(h2, w3, preferred_element_type=jnp.float32) + b3    # (B, 128)


def mlp_kernel(x_ref, p_ref, o_ref):
    o_ref[...] = _mlp_body(x_ref[...], p_ref)


def mlp_kernel_batched(x_ref, p_ref, o_ref):
    # Blocks are (1, B, 16) / (1, B, 128); index the leading axis away.
    o_ref[0] = _mlp_body(x_ref[0], p_ref)


def pack_params(params):
    """Pack all kernel-side parameters into one (304, 128) f32, lane-dense, 8-row-aligned blob."""
    w1, _b1, gamma, beta, w2, b2, w3, b3 = params   # b1 intentionally not packed (BN absorbs it)
    blob = jnp.zeros((PACK_ROWS, PACK_LANES), jnp.float32)
    blob = blob.at[W1_R:W1_R + 16, 0:32].set(w1)
    blob = blob.at[G_R, 0:32].set(gamma.reshape(32))
    blob = blob.at[BETA_R, 0:32].set(beta.reshape(32))
    blob = blob.at[W2_R:W2_R + 32, 0:64].set(w2)      # rows 32..127 of the K block stay zero
    blob = blob.at[B2_R, 0:64].set(b2.reshape(64))
    blob = blob.at[W3_R:W3_R + 64, 0:26].set(w3)      # rows 64..127 of the K block stay zero
    blob = blob.at[B3_R, 0:26].set(b3.reshape(26))
    return blob


_FLOPS_PER_ROW = 2 * (16 * 32 + 32 * 64 + 64 * 26)


def model_forward(x, packed):
    """Single BN batch. Returns lane-dense padded logits (B, 128); logical logits = out[:, :26].

    The 26-class slice is intentionally NOT done here (it would be a separate XLA copy
    dispatch); downstream consumers should slice lazily or consume lanes 0..25 directly.
    """
    B = x.shape[0]
    return pl.pallas_call(
        mlp_kernel,
        out_shape=jax.ShapeDtypeStruct((B, OUT_PAD), jnp.float32),
        in_specs=[
            pl.BlockSpec((B, 16), lambda: (0, 0)),
            pl.BlockSpec((PACK_ROWS, PACK_LANES), lambda: (0, 0)),
        ],
        out_specs=pl.BlockSpec((B, OUT_PAD), lambda: (0, 0)),
        compiler_params=pltpu.CompilerParams(vmem_limit_bytes=32 * 1024 * 1024),
        cost_estimate=pl.CostEstimate(
            flops=B * _FLOPS_PER_ROW,
            transcendentals=32,
            bytes_accessed=(B * 16 + PACK_ROWS * PACK_LANES + B * OUT_PAD) * 4,
        ),
    )(x, packed)


def model_forward_batched(xs, packed):
    """G independent BN batches in one launch: xs is (G, B, 16) -> (G, B, 128) padded logits.

    The param blob's index_map is constant, so it stays resident in VMEM across grid steps;
    the G axis is 'parallel' so v7x megacore can split it across TensorCores.
    """
    G, B, _ = xs.shape
    return pl.pallas_call(
        mlp_kernel_batched,
        out_shape=jax.ShapeDtypeStruct((G, B, OUT_PAD), jnp.float32),
        grid=(G,),
        in_specs=[
            pl.BlockSpec((1, B, 16), lambda g: (g, 0, 0)),
            pl.BlockSpec((PACK_ROWS, PACK_LANES), lambda g: (0, 0)),
        ],
        out_specs=pl.BlockSpec((1, B, OUT_PAD), lambda g: (g, 0, 0)),
        compiler_params=pltpu.CompilerParams(
            dimension_semantics=("parallel",),
            vmem_limit_bytes=32 * 1024 * 1024,
        ),
        cost_estimate=pl.CostEstimate(
            flops=G * B * _FLOPS_PER_ROW,
            transcendentals=32 * G,
            bytes_accessed=(G * B * 16 + PACK_ROWS * PACK_LANES + G * B * OUT_PAD) * 4,
        ),
    )(xs, packed)


def init_params(key):
    # Deterministic PyTorch-style init: weights/biases ~ U(-1/sqrt(fan_in), 1/sqrt(fan_in)).
    ks = jax.random.split(key, 6)

    def linear(kw, kb, fan_in, fan_out):
        bound = 1.0 / jnp.sqrt(fan_in)
        w = jax.random.uniform(kw, (fan_in, fan_out), jnp.float32, -bound, bound)
        b = jax.random.uniform(kb, (1, fan_out), jnp.float32, -bound, bound)
        return w, b

    w1, b1 = linear(ks[0], ks[1], 16, 32)
    w2, b2 = linear(ks[2], ks[3], 32, 64)
    w3, b3 = linear(ks[4], ks[5], 64, 26)
    gamma = jnp.ones((1, 32), jnp.float32)     # BatchNorm1d weight
    beta = jnp.zeros((1, 32), jnp.float32)     # BatchNorm1d bias
    return (w1, b1, gamma, beta, w2, b2, w3, b3)


def reference_forward(x, params):
    # Includes b1 -- verifies that dropping it inside the kernel is exact (BN mean absorbs it).
    w1, b1, g, beta, w2, b2, w3, b3 = params
    h1 = x @ w1 + b1
    mean = jnp.mean(h1, axis=0, keepdims=True)
    var = jnp.mean((h1 - mean) ** 2, axis=0, keepdims=True)
    h1 = jnp.maximum((h1 - mean) * jax.lax.rsqrt(var + BN_EPS) * g + beta, 0.0)
    h2 = jnp.maximum(h1 @ w2 + b2, 0.0)
    return h2 @ w3 + b3


if __name__ == "__main__":
    key = jax.random.PRNGKey(0)
    k_x, k_xs, k_p = jax.random.split(key, 3)
    B, G = 8, 4
    x = jax.random.normal(k_x, (B, 16), jnp.float32)
    xs = jax.random.normal(k_xs, (G, B, 16), jnp.float32)
    params = init_params(k_p)
    packed = pack_params(params)

    # Single-batch path (lane-dense padded output; consumer-side slice for the check only).
    out_padded = jax.block_until_ready(model_forward(x, packed))
    assert out_padded.shape == (B, OUT_PAD), out_padded.shape
    logits = out_padded[:, :26]
    ref = reference_forward(x, params)
    assert logits.shape == (B, 26), logits.shape
    assert jnp.allclose(logits, ref, atol=1e-4, rtol=1e-4), "single-batch mismatch vs reference"

    # Batched (launch-amortized / megacore) path: G independent BN batches, one pallas_call.
    outs_padded = jax.block_until_ready(model_forward_batched(xs, packed))
    assert outs_padded.shape == (G, B, OUT_PAD), outs_padded.shape
    for g in range(G):
        ref_g = reference_forward(xs[g], params)
        assert jnp.allclose(outs_padded[g, :, :26], ref_g, atol=1e-4, rtol=1e-4), (
            f"batched mismatch vs reference at group {g}")

    print("KERNEL_OK")
</pallas_src>

<mosaic_0001>
module attributes {stable_mosaic.version = 11 : i64} {
  func.func @mlp_kernel(%arg0: memref<8x16xf32, #tpu.memory_space<vmem>>, %arg1: memref<304x128xf32, #tpu.memory_space<vmem>>, %arg2: memref<8x128xf32, #tpu.memory_space<vmem>>) attributes {dimension_semantics = [], scalar_prefetch = 0 : i64, scratch_operands = 0 : i64, tpu.core_type = #tpu.core_type<tc>} {
    %c0 = arith.constant 0 : index
    %c0_0 = arith.constant 0 : index
    %0 = vector.load %arg0[%c0, %c0_0] : memref<8x16xf32, #tpu.memory_space<vmem>>, vector<8x16xf32>
    %c0_1 = arith.constant 0 : index
    %c0_2 = arith.constant 0 : index
    %1 = vector.load %arg1[%c0_1, %c0_2] : memref<304x128xf32, #tpu.memory_space<vmem>>, vector<16x128xf32>
    %cst = arith.constant dense<0.000000e+00> : vector<8x128xf32>
    %2 = tpu.matmul %0, %1, %cst {dimension_numbers = #tpu.dot_dimension_numbers<[1], [0], [0], [1], [0, 0, 1, 1], [], []>} : vector<8x16xf32>, vector<16x128xf32>, vector<8x128xf32> -> vector<8x128xf32>
    %cst_3 = arith.constant dense<0.000000e+00> : vector<128xf32>
    %3 = vector.multi_reduction <add>, %2, %cst_3 [0] : vector<8x128xf32> to vector<128xf32>
    %4 = vector.shape_cast %3 : vector<128xf32> to vector<1x128xf32>
    %5 = arith.mulf %2, %2 : vector<8x128xf32>
    %cst_4 = arith.constant dense<0.000000e+00> : vector<128xf32>
    %6 = vector.multi_reduction <add>, %5, %cst_4 [0] : vector<8x128xf32> to vector<128xf32>
    %7 = vector.shape_cast %6 : vector<128xf32> to vector<1x128xf32>
    %cst_5 = arith.constant 1.250000e-01 : f32
    %8 = vector.broadcast %cst_5 : f32 to vector<1x128xf32>
    %9 = arith.mulf %4, %8 : vector<1x128xf32>
    %cst_6 = arith.constant 1.250000e-01 : f32
    %10 = vector.broadcast %cst_6 : f32 to vector<1x128xf32>
    %11 = arith.mulf %7, %10 : vector<1x128xf32>
    %12 = arith.mulf %9, %9 : vector<1x128xf32>
    %13 = arith.subf %11, %12 : vector<1x128xf32>
    %cst_7 = arith.constant 0.000000e+00 : f32
    %14 = vector.broadcast %cst_7 : f32 to vector<1x128xf32>
    %15 = arith.maximumf %13, %14 : vector<1x128xf32>
    %c16 = arith.constant 16 : index
    %c0_8 = arith.constant 0 : index
    %16 = vector.load %arg1[%c16, %c0_8] : memref<304x128xf32, #tpu.memory_space<vmem>>, vector<1x128xf32>
    %c24 = arith.constant 24 : index
    %c0_9 = arith.constant 0 : index
    %17 = vector.load %arg1[%c24, %c0_9] : memref<304x128xf32, #tpu.memory_space<vmem>>, vector<1x128xf32>
    %cst_10 = arith.constant 9.99999974E-6 : f32
    %18 = vector.broadcast %cst_10 : f32 to vector<1x128xf32>
    %19 = arith.addf %15, %18 : vector<1x128xf32>
    %20 = math.rsqrt %19 : vector<1x128xf32>
    %21 = arith.mulf %16, %20 : vector<1x128xf32>
    %22 = arith.mulf %9, %21 : vector<1x128xf32>
    %23 = arith.subf %17, %22 : vector<1x128xf32>
    %24 = vector.broadcast %21 : vector<1x128xf32> to vector<8x128xf32>
    %25 = arith.mulf %2, %24 : vector<8x128xf32>
    %26 = vector.broadcast %23 : vector<1x128xf32> to vector<8x128xf32>
    %27 = arith.addf %25, %26 : vector<8x128xf32>
    %cst_11 = arith.constant 0.000000e+00 : f32
    %28 = vector.broadcast %cst_11 : f32 to vector<8x128xf32>
    %29 = arith.maximumf %27, %28 : vector<8x128xf32>
    %c32 = arith.constant 32 : index
    %c0_12 = arith.constant 0 : index
    %30 = vector.load %arg1[%c32, %c0_12] : memref<304x128xf32, #tpu.memory_space<vmem>>, vector<128x128xf32>
    %c160 = arith.constant 160 : index
    %c0_13 = arith.constant 0 : index
    %31 = vector.load %arg1[%c160, %c0_13] : memref<304x128xf32, #tpu.memory_space<vmem>>, vector<1x128xf32>
    %cst_14 = arith.constant dense<0.000000e+00> : vector<8x128xf32>
    %32 = tpu.matmul %29, %30, %cst_14 {dimension_numbers = #tpu.dot_dimension_numbers<[1], [0], [0], [1], [0, 0, 1, 1], [], []>} : vector<8x128xf32>, vector<128x128xf32>, vector<8x128xf32> -> vector<8x128xf32>
    %33 = vector.broadcast %31 : vector<1x128xf32> to vector<8x128xf32>
    %34 = arith.addf %32, %33 : vector<8x128xf32>
    %cst_15 = arith.constant 0.000000e+00 : f32
    %35 = vector.broadcast %cst_15 : f32 to vector<8x128xf32>
    %36 = arith.maximumf %34, %35 : vector<8x128xf32>
    %c168 = arith.constant 168 : index
    %c0_16 = arith.constant 0 : index
    %37 = vector.load %arg1[%c168, %c0_16] : memref<304x128xf32, #tpu.memory_space<vmem>>, vector<128x128xf32>
    %c296 = arith.constant 296 : index
    %c0_17 = arith.constant 0 : index
    %38 = vector.load %arg1[%c296, %c0_17] : memref<304x128xf32, #tpu.memory_space<vmem>>, vector<1x128xf32>
    %cst_18 = arith.constant dense<0.000000e+00> : vector<8x128xf32>
    %39 = tpu.matmul %36, %37, %cst_18 {dimension_numbers = #tpu.dot_dimension_numbers<[1], [0], [0], [1], [0, 0, 1, 1], [], []>} : vector<8x128xf32>, vector<128x128xf32>, vector<8x128xf32> -> vector<8x128xf32>
    %40 = vector.broadcast %38 : vector<1x128xf32> to vector<8x128xf32>
    %41 = arith.addf %39, %40 : vector<8x128xf32>
    %c0_19 = arith.constant 0 : index
    %c0_20 = arith.constant 0 : index
    %42 = vector.load %arg2[%c0_19, %c0_20] : memref<8x128xf32, #tpu.memory_space<vmem>>, vector<8x128xf32>
    tpu.vector_store %arg2[%c0_19, %c0_20], %41 {strides = array<i32>} : memref<8x128xf32, #tpu.memory_space<vmem>>, vector<8x128xf32>,
    return
  }
}

</mosaic_0001>

<llo_original>
// kernel: tpu_custom_call.1
$region0: #{tpu_custom_call.1}
  #allocation0 [shape = 'u32[]', space=smem, size = 0x4, offset = 0x4, fixed_abs, tag = 'smem constant byte address 0x4 - core index']
  #allocation1 [shape = 'u32[144,128]{1,0:T(1,128)}', space=vmem, size = 0x12000, scoped, tag = 'internal scratch']
  %s0 = inlined_call_operand.hbm [shape: f32[8,16], index: 0, kind: input, shape index: {}]
  %s1 = inlined_call_operand.hbm [shape: f32[304,128], index: 1, kind: input, shape index: {}]
  %s2 = inlined_call_operand.hbm [shape: f32[8,128], index: 2, kind: output, shape index: {}]
  %s3 = sld [smem:[#allocation0]]
  $region26: #{tpu_custom_call.1} parent=0
    _
  %s5 = ssub.s32 1, %s3
  %s6 = scalar_select 0, %s5, %s3
  $region1: #{tpu_custom_call.1} parent=0
    #allocation2 [shape = 'u8[4096]{0}', space=vmem, size = 0x1000, scoped, tag = 'input window, operand 0, single buffered']
    #allocation3 [shape = 's32[1]{0}', space=sflag, size = 0x4, scoped, tag = 'scoped memory for tpu_custom_call.1']
    #allocation4 [shape = 's32[1]{0}', space=sflag, size = 0x4, scoped, tag = 'scoped memory for tpu_custom_call.1']
    #allocation5 [shape = 'u8[155648]{0}', space=vmem, size = 0x26000, scoped, tag = 'input window, operand 1, single buffered']
    #allocation6 [shape = 's32[1]{0}', space=sflag, size = 0x4, scoped, tag = 'scoped memory for tpu_custom_call.1']
    #allocation7 [shape = 'u8[4096]{0}', space=vmem, size = 0x1000, scoped, tag = 'output window, operand 0, single buffered']
    %7 = vsyncpa [#allocation3], 0
    %8 = vsyncpa [#allocation6], 0
    %9 = vsyncpa [#allocation4], 0
    // Predicated region
    $region2: #{tpu_custom_call.1} parent=1 // pred_check
      _
    $region3: #{tpu_custom_call.1} parent=1 // pred_check_branch
      %11 = sbr.rel (0) target = $region5
    $region4: #{tpu_custom_call.1} parent=1 // pred_region
      %s13 = ssub.s32 128, 128
      %14 = vsyncadd [#allocation3], %s13
      %s16 = sshll.u32 [#allocation2], 4
      %s17 = int_to_ptr.vmem [resolvable:$true] %s16
      %19 = dma.hbm_to_vmem [thread:$0]  %s0, 128, %s17, [#allocation3]
    $region5: #{tpu_custom_call.1} parent=1 // pred_fallthru
      _
    // Predicated region
    $region6: #{tpu_custom_call.1} parent=1 // pred_check
      _
    $region7: #{tpu_custom_call.1} parent=1 // pred_check_branch
      %21 = sbr.rel (0) target = $region9
    $region8: #{tpu_custom_call.1} parent=1 // pred_region
      %s23 = ssub.s32 4864, 4864
      %24 = vsyncadd [#allocation6], %s23
      %s25 = sshll.u32 [#allocation5], 4
      %s26 = int_to_ptr.vmem [resolvable:$true] %s25
      %31 = dma.hbm_to_vmem [thread:$0]  %s1, 4864, %s26, [#allocation6], 128, 128, 8
    $region9: #{tpu_custom_call.1} parent=1 // pred_fallthru
      _
    // Predicated region
    $region10: #{tpu_custom_call.1} parent=1 // pred_check
      _
    $region11: #{tpu_custom_call.1} parent=1 // pred_check_branch
      %33 = sbr.rel (0) target = $region13
    $region12: #{tpu_custom_call.1} parent=1 // pred_region
      %34 = dma.done [#allocation3], 128
    $region13: #{tpu_custom_call.1} parent=1 // pred_fallthru
      _
    // Predicated region
    $region14: #{tpu_custom_call.1} parent=1 // pred_check
      _
    $region15: #{tpu_custom_call.1} parent=1 // pred_check_branch
      %36 = sbr.rel (0) target = $region17
    $region16: #{tpu_custom_call.1} parent=1 // pred_region
      %37 = dma.done [#allocation6], 4864
    $region17: #{tpu_custom_call.1} parent=1 // pred_fallthru
      _
    %v38 = vld [vmem:[#allocation2] sm:$0xff]
    %v39 = vld [vmem:[#allocation5] sm:$0xff]
    %v40 = vld [vmem:[#allocation5 + $0x8] sm:$0xff]
    %vm41 = vcmask 130048
    %v43 = vsel %vm41, %v38, 0
    %45 = vmatprep.subr.mxu0 0.0
    %46 = vmatpush1.msra.mxu0 %v39
    %47 = vmatprep.subr.mxu0 0.0
    %48 = vmatpush1.msra.mxu0 %v40
    %49 = vmatprep.subr.mxu0 0.0
    %50 = vmatpush1.msra.mxu0 0.0
    %51 = vmatprep.subr.mxu0 0.0
    %52 = vmatpush1.msra.mxu0 0.0
    %53 = vmatprep.subr.mxu0 0.0
    %54 = vmatpush1.msra.mxu0 0.0
    %55 = vmatprep.subr.mxu0 0.0
    %56 = vmatpush1.msra.mxu0 0.0
    %57 = vmatprep.subr.mxu0 0.0
    %58 = vmatpush1.msra.mxu0 0.0
    %59 = vmatprep.subr.mxu0 0.0
    %60 = vmatpush1.msra.mxu0 0.0
    %61 = vmatprep.subr.mxu0 0.0
    %62 = vmatpush1.msra.mxu0 0.0
    %63 = vmatprep.subr.mxu0 0.0
    %64 = vmatpush1.msra.mxu0 0.0
    %65 = vmatprep.subr.mxu0 0.0
    %66 = vmatpush1.msra.mxu0 0.0
    %67 = vmatprep.subr.mxu0 0.0
    %68 = vmatpush1.msra.mxu0 0.0
    %69 = vmatprep.subr.mxu0 0.0
    %70 = vmatpush1.msra.mxu0 0.0
    %71 = vmatprep.subr.mxu0 0.0
    %72 = vmatpush1.msra.mxu0 0.0
    %73 = vmatprep.subr.mxu0 0.0
    %74 = vmatpush1.msra.mxu0 0.0
    %75 = vmatprep.subr.mxu0 0.0
    %76 = vmatpush1.msra.mxu0 0.0
    %77 = vmatprep.subr.mxu0 0.0
    %78 = vmatpush1.msra.mxu0 0.0
    %79 = vmatprep.subr.mxu0 0.0
    %80 = vmatpush1.msra.mxu0 0.0
    %81 = vmatprep.subr.mxu0 0.0
    %82 = vmatpush1.msra.mxu0 0.0
    %83 = vmatprep.subr.mxu0 0.0
    %84 = vmatpush1.msra.mxu0 0.0
    %85 = vmatprep.subr.mxu0 0.0
    %86 = vmatpush1.msra.mxu0 0.0
    %87 = vmatprep.subr.mxu0 0.0
    %88 = vmatpush1.msra.mxu0 0.0
    %89 = vmatprep.subr.mxu0 0.0
    %90 = vmatpush1.msra.mxu0 0.0
    %91 = vmatprep.subr.mxu0 0.0
    %92 = vmatpush1.msra.mxu0 0.0
    %93 = vmatprep.subr.mxu0 0.0
    %94 = vmatpush1.msra.mxu0 0.0
    %95 = vmatprep.subr.mxu0 0.0
    %96 = vmatpush1.msra.mxu0 0.0
    %97 = vmatprep.subr.mxu0 0.0
    %98 = vmatpush1.msra.mxu0 0.0
    %99 = vmatprep.subr.mxu0 0.0
    %100 = vmatpush1.msra.mxu0 0.0
    %101 = vmatprep.subr.mxu0 0.0
    %102 = vmatpush1.msra.mxu0 0.0
    %103 = vmatprep.subr.mxu0 0.0
    %104 = vmatpush1.msra.mxu0 0.0
    %105 = vmatprep.subr.mxu0 0.0
    %106 = vmatpush1.msra.mxu0 0.0
    %107 = vmatprep.subr.mxu0 0.0
    %108 = vmatpush1.msra.mxu0 0.0
    %109 = vmatprep.mubr.f32.mxu0 0.0
    %110 = vmatmul.mubr.f32.gmra.mrb[0].mxu0 %v43
    %v111 = vpop.f32.mrb[0].mxu0
    %v112 = vadd.f32 0.0, %v111
    %v113 = vpop.f32.mrb[0].mxu0
    %114 = vdwg.mxu0
    %v115 = vrot.slane %v112, 4
    %v116 = vadd.f32 %v112, %v115
    %v117 = vrot.slane %v116, 2
    %v118 = vadd.f32 %v116, %v117
    %v119 = vrot.slane %v118, 1
    %v120 = vadd.f32 %v118, %v119
    %v121 = vmul.f32 %v112, %v112
    %v122 = vrot.slane %v121, 4
    %v123 = vadd.f32 %v121, %v122
    %v124 = vrot.slane %v123, 2
    %v125 = vadd.f32 %v123, %v124
    %v126 = vrot.slane %v125, 1
    %v127 = vadd.f32 %v125, %v126
    %v128 = vmul.f32 %v120, 0.125
    %v129 = vmul.f32 %v127, 0.125
    %v130 = vmul.f32 %v128, %v128
    %v131 = vsub.f32 %v129, %v130
    %v132 = vmax.f32 %v131, 0.0
    %v133 = vld [vmem:[#allocation5 + $0x10] sm:$0x1]
    %v134 = vld [vmem:[#allocation5 + $0x18] sm:$0x1]
    %v135 = vadd.f32 %v132, 1e-05
    %v136 = vrsqrt.pop %v135
    %v137 = vmul.f32 %v133, %v136
    %v138 = vmul.f32 %v128, %v137
    %v139 = vsub.f32 %v134, %v138
    %v140 = vlaneseq
    %v141 = vshrl.u32 %v140, 7
    %v142 = vsub.s32 0, %v141
    %v143 = vrot.slane %v137, %v142
    %v144 = vmul.f32 %v112, %v143
    %v145 = vlaneseq
    %v146 = vshrl.u32 %v145, 7
    %v147 = vsub.s32 0, %v146
    %v148 = vrot.slane %v139, %v147
    %v149 = vadd.f32 %v144, %v148
    %v150 = vmax.f32 %v149, 0.0
    %v151 = vld [vmem:[#allocation5 + $0x20] sm:$0xff]
    %v152 = vld [vmem:[#allocation5 + $0x28] sm:$0xff]
    %v153 = vld [vmem:[#allocation5 + $0x30] sm:$0xff]
    %v154 = vld [vmem:[#allocation5 + $0x38] sm:$0xff]
    %v155 = vld [vmem:[#allocation5 + $0x40] sm:$0xff]
    %v156 = vld [vmem:[#allocation5 + $0x48] sm:$0xff]
    %v157 = vld [vmem:[#allocation5 + $0x50] sm:$0xff]
    %v158 = vld [vmem:[#allocation5 + $0x58] sm:$0xff]
    %v159 = vld [vmem:[#allocation5 + $0x60] sm:$0xff]
    %v160 = vld [vmem:[#allocation5 + $0x68] sm:$0xff]
    %v161 = vld [vmem:[#allocation5 + $0x70] sm:$0xff]
    %v162 = vld [vmem:[#allocation5 + $0x78] sm:$0xff]
    %v163 = vld [vmem:[#allocation5 + $0x80] sm:$0xff]
    %v164 = vld [vmem:[#allocation5 + $0x88] sm:$0xff]
    %v165 = vld [vmem:[#allocation5 + $0x90] sm:$0xff]
    %v166 = vld [vmem:[#allocation5 + $0x98] sm:$0xff]
    %v167 = vld [vmem:[#allocation5 + $0xa0] sm:$0x1]
    %v168 = vlaneseq
    %v169 = vshrl.u32 %v168, 7
    %v170 = vsub.s32 0, %v169
    %v171 = vrot.slane %v167, %v170
    %172 = vmatprep.subr.mxu0 0.0
    %173 = vmatpush1.msra.mxu0 %v151
    %174 = vmatprep.subr.mxu0 0.0
    %175 = vmatpush1.msra.mxu0 %v152
    %176 = vmatprep.subr.mxu0 0.0
    %177 = vmatpush1.msra.mxu0 %v153
    %178 = vmatprep.subr.mxu0 0.0
    %179 = vmatpush1.msra.mxu0 %v154
    %180 = vmatprep.subr.mxu0 0.0
    %181 = vmatpush1.msra.mxu0 %v155
    %182 = vmatprep.subr.mxu0 0.0
    %183 = vmatpush1.msra.mxu0 %v156
    %184 = vmatprep.subr.mxu0 0.0
    %185 = vmatpush1.msra.mxu0 %v157
    %186 = vmatprep.subr.mxu0 0.0
    %187 = vmatpush1.msra.mxu0 %v158
    %188 = vmatprep.subr.mxu0 0.0
    %189 = vmatpush1.msra.mxu0 %v159
    %190 = vmatprep.subr.mxu0 0.0
    %191 = vmatpush1.msra.mxu0 %v160
    %192 = vmatprep.subr.mxu0 0.0
    %193 = vmatpush1.msra.mxu0 %v161
    %194 = vmatprep.subr.mxu0 0.0
    %195 = vmatpush1.msra.mxu0 %v162
    %196 = vmatprep.subr.mxu0 0.0
    %197 = vmatpush1.msra.mxu0 %v163
    %198 = vmatprep.subr.mxu0 0.0
    %199 = vmatpush1.msra.mxu0 %v164
    %200 = vmatprep.subr.mxu0 0.0
    %201 = vmatpush1.msra.mxu0 %v165
    %202 = vmatprep.subr.mxu0 0.0
    %203 = vmatpush1.msra.mxu0 %v166
    %204 = vmatprep.subr.mxu0 0.0
    %205 = vmatpush1.msra.mxu0 0.0
    %206 = vmatprep.subr.mxu0 0.0
    %207 = vmatpush1.msra.mxu0 0.0
    %208 = vmatprep.subr.mxu0 0.0
    %209 = vmatpush1.msra.mxu0 0.0
    %210 = vmatprep.subr.mxu0 0.0
    %211 = vmatpush1.msra.mxu0 0.0
    %212 = vmatprep.subr.mxu0 0.0
    %213 = vmatpush1.msra.mxu0 0.0
    %214 = vmatprep.subr.mxu0 0.0
    %215 = vmatpush1.msra.mxu0 0.0
    %216 = vmatprep.subr.mxu0 0.0
    %217 = vmatpush1.msra.mxu0 0.0
    %218 = vmatprep.subr.mxu0 0.0
    %219 = vmatpush1.msra.mxu0 0.0
    %220 = vmatprep.subr.mxu0 0.0
    %221 = vmatpush1.msra.mxu0 0.0
    %222 = vmatprep.subr.mxu0 0.0
    %223 = vmatpush1.msra.mxu0 0.0
    %224 = vmatprep.subr.mxu0 0.0
    %225 = vmatpush1.msra.mxu0 0.0
    %226 = vmatprep.subr.mxu0 0.0
    %227 = vmatpush1.msra.mxu0 0.0
    %228 = vmatprep.subr.mxu0 0.0
    %229 = vmatpush1.msra.mxu0 0.0
    %230 = vmatprep.subr.mxu0 0.0
    %231 = vmatpush1.msra.mxu0 0.0
    %232 = vmatprep.subr.mxu0 0.0
    %233 = vmatpush1.msra.mxu0 0.0
    %234 = vmatprep.subr.mxu0 0.0
    %235 = vmatpush1.msra.mxu0 0.0
    %236 = vmatprep.mubr.f32.mxu0 0.0
    %237 = vmatmul.mubr.f32.gmra.mrb[0].mxu0 %v150
    %v238 = vpop.f32.mrb[0].mxu0
    %v239 = vadd.f32 %v171, %v238
    %v240 = vpop.f32.mrb[0].mxu0
    %241 = vdwg.mxu0
    %v242 = vmax.f32 %v239, 0.0
    %v243 = vld [vmem:[#allocation5 + $0xa8] sm:$0xff]
    %v244 = vld [vmem:[#allocation5 + $0xb0] sm:$0xff]
    %v245 = vld [vmem:[#allocation5 + $0xb8] sm:$0xff]
    %v246 = vld [vmem:[#allocation5 + $0xc0] sm:$0xff]
    %v247 = vld [vmem:[#allocation5 + $0xc8] sm:$0xff]
    %v248 = vld [vmem:[#allocation5 + $0xd0] sm:$0xff]
    %v249 = vld [vmem:[#allocation5 + $0xd8] sm:$0xff]
    %v250 = vld [vmem:[#allocation5 + $0xe0] sm:$0xff]
    %v251 = vld [vmem:[#allocation5 + $0xe8] sm:$0xff]
    %v252 = vld [vmem:[#allocation5 + $0xf0] sm:$0xff]
    %v253 = vld [vmem:[#allocation5 + $0xf8] sm:$0xff]
    %v254 = vld [vmem:[#allocation5 + $0x100] sm:$0xff]
    %v255 = vld [vmem:[#allocation5 + $0x108] sm:$0xff]
    %v256 = vld [vmem:[#allocation5 + $0x110] sm:$0xff]
    %v257 = vld [vmem:[#allocation5 + $0x118] sm:$0xff]
    %v258 = vld [vmem:[#allocation5 + $0x120] sm:$0xff]
    %v259 = vld [vmem:[#allocation5 + $0x128] sm:$0x1]
    %v260 = vlaneseq
    %v261 = vshrl.u32 %v260, 7
    %v262 = vsub.s32 0, %v261
    %v263 = vrot.slane %v259, %v262
    %264 = vmatprep.subr.mxu0 0.0
    %265 = vmatpush1.msra.mxu0 %v243
    %266 = vmatprep.subr.mxu0 0.0
    %267 = vmatpush1.msra.mxu0 %v244
    %268 = vmatprep.subr.mxu0 0.0
    %269 = vmatpush1.msra.mxu0 %v245
    %270 = vmatprep.subr.mxu0 0.0
    %271 = vmatpush1.msra.mxu0 %v246
    %272 = vmatprep.subr.mxu0 0.0
    %273 = vmatpush1.msra.mxu0 %v247
    %274 = vmatprep.subr.mxu0 0.0
    %275 = vmatpush1.msra.mxu0 %v248
    %276 = vmatprep.subr.mxu0 0.0
    %277 = vmatpush1.msra.mxu0 %v249
    %278 = vmatprep.subr.mxu0 0.0
    %279 = vmatpush1.msra.mxu0 %v250
    %280 = vmatprep.subr.mxu0 0.0
    %281 = vmatpush1.msra.mxu0 %v251
    %282 = vmatprep.subr.mxu0 0.0
    %283 = vmatpush1.msra.mxu0 %v252
    %284 = vmatprep.subr.mxu0 0.0
    %285 = vmatpush1.msra.mxu0 %v253
    %286 = vmatprep.subr.mxu0 0.0
    %287 = vmatpush1.msra.mxu0 %v254
    %288 = vmatprep.subr.mxu0 0.0
    %289 = vmatpush1.msra.mxu0 %v255
    %290 = vmatprep.subr.mxu0 0.0
    %291 = vmatpush1.msra.mxu0 %v256
    %292 = vmatprep.subr.mxu0 0.0
    %293 = vmatpush1.msra.mxu0 %v257
    %294 = vmatprep.subr.mxu0 0.0
    %295 = vmatpush1.msra.mxu0 %v258
    %296 = vmatprep.subr.mxu0 0.0
    %297 = vmatpush1.msra.mxu0 0.0
    %298 = vmatprep.subr.mxu0 0.0
    %299 = vmatpush1.msra.mxu0 0.0
    %300 = vmatprep.subr.mxu0 0.0
    %301 = vmatpush1.msra.mxu0 0.0
    %302 = vmatprep.subr.mxu0 0.0
    %303 = vmatpush1.msra.mxu0 0.0
    %304 = vmatprep.subr.mxu0 0.0
    %305 = vmatpush1.msra.mxu0 0.0
    %306 = vmatprep.subr.mxu0 0.0
    %307 = vmatpush1.msra.mxu0 0.0
    %308 = vmatprep.subr.mxu0 0.0
    %309 = vmatpush1.msra.mxu0 0.0
    %310 = vmatprep.subr.mxu0 0.0
    %311 = vmatpush1.msra.mxu0 0.0
    %312 = vmatprep.subr.mxu0 0.0
    %313 = vmatpush1.msra.mxu0 0.0
    %314 = vmatprep.subr.mxu0 0.0
    %315 = vmatpush1.msra.mxu0 0.0
    %316 = vmatprep.subr.mxu0 0.0
    %317 = vmatpush1.msra.mxu0 0.0
    %318 = vmatprep.subr.mxu0 0.0
    %319 = vmatpush1.msra.mxu0 0.0
    %320 = vmatprep.subr.mxu0 0.0
    %321 = vmatpush1.msra.mxu0 0.0
    %322 = vmatprep.subr.mxu0 0.0
    %323 = vmatpush1.msra.mxu0 0.0
    %324 = vmatprep.subr.mxu0 0.0
    %325 = vmatpush1.msra.mxu0 0.0
    %326 = vmatprep.subr.mxu0 0.0
    %327 = vmatpush1.msra.mxu0 0.0
    %328 = vmatprep.mubr.f32.mxu0 0.0
    %329 = vmatmul.mubr.f32.gmra.mrb[0].mxu0 %v242
    %v330 = vpop.f32.mrb[0].mxu0
    %v331 = vadd.f32 %v263, %v330
    %v332 = vpop.f32.mrb[0].mxu0
    %333 = vdwg.mxu0
    %334 = vst [vmem:[#allocation7] sm:$0xff] %v331
    // Predicated region
    $region18: #{tpu_custom_call.1} parent=1 // pred_check
      _
    $region19: #{tpu_custom_call.1} parent=1 // pred_check_branch
      %336 = sbr.rel (0) target = $region21
    $region20: #{tpu_custom_call.1} parent=1 // pred_region
      %s338 = ssub.s32 128, 128
      %339 = vsyncadd [#allocation4], %s338
      %s341 = sshll.u32 [#allocation7], 4
      %s342 = int_to_ptr.vmem [resolvable:$true] %s341
      %344 = dma.vmem_to_hbm [thread:$0]  %s342, 128, %s2, [#allocation4]
    $region21: #{tpu_custom_call.1} parent=1 // pred_fallthru
      _
    // Predicated region
    $region22: #{tpu_custom_call.1} parent=1 // pred_check
      _
    $region23: #{tpu_custom_call.1} parent=1 // pred_check_branch
      %346 = sbr.rel (0) target = $region25
    $region24: #{tpu_custom_call.1} parent=1 // pred_region
      %347 = dma.done [#allocation4], 128
    $region25: #{tpu_custom_call.1} parent=1 // pred_fallthru
      _
    %348 = vsyncpa [#allocation3], 1
    %349 = vsyncpa [#allocation6], 1
    %350 = vsyncpa [#allocation4], 1

</llo_original>
